<compile_context>
chip_gen: v7x
topology: tpu7x:2x2x1
jax: 0.10.0
libtpu: 0.0.40
codegen_flags: <defaults>
</compile_context>

<pallas_src>
import math

import jax
import jax.numpy as jnp
from jax.experimental import pallas as pl
from jax.experimental.pallas import tpu as pltpu


# x[M, K] contracted with w[N, K] along K  ==  x @ w.T  (PyTorch Linear, bias=False)
_DN_NT = (((1,), (1,)), ((), ()))


def _tile(dim, pref):
    """Largest of (pref, full dim) that exactly tiles `dim` (falls back to full dim)."""
    return pref if (dim > pref and dim % pref == 0) else dim


# ----------------------------------------------------------------------------
# Kernel 1: generic tiled linear  y = x @ w.T   (w in [out, in] layout)
# ----------------------------------------------------------------------------
def _linear_kernel(x_ref, w_ref, o_ref, acc_ref):
    @pl.when(pl.program_id(2) == 0)
    def _init():
        acc_ref[...] = jnp.zeros_like(acc_ref)

    acc_ref[...] += jax.lax.dot_general(
        x_ref[...], w_ref[...], _DN_NT, preferred_element_type=jnp.float32
    )

    @pl.when(pl.program_id(2) == pl.num_programs(2) - 1)
    def _done():
        o_ref[...] = acc_ref[...].astype(o_ref.dtype)


def pallas_linear(x, w, *, tm=256, tn=256, tk=512):
    """x: [M, K], w: [N, K] (PyTorch [out, in]) -> [M, N] = x @ w.T."""
    M, K = x.shape
    N, K2 = w.shape
    assert K == K2
    tm, tn, tk = _tile(M, tm), _tile(N, tn), _tile(K, tk)
    grid = (M // tm, N // tn, K // tk)
    return pl.pallas_call(
        _linear_kernel,
        out_shape=jax.ShapeDtypeStruct((M, N), x.dtype),
        grid_spec=pltpu.PrefetchScalarGridSpec(
            num_scalar_prefetch=0,
            grid=grid,
            in_specs=[
                pl.BlockSpec((tm, tk), lambda i, j, k: (i, k)),
                pl.BlockSpec((tn, tk), lambda i, j, k: (j, k)),
            ],
            out_specs=pl.BlockSpec((tm, tn), lambda i, j, k: (i, j)),
            scratch_shapes=[pltpu.VMEM((tm, tn), jnp.float32)],
        ),
        compiler_params=pltpu.CompilerParams(
            dimension_semantics=("parallel", "parallel", "arbitrary"),
            vmem_limit_bytes=64 * 1024 * 1024,
        ),
    )(x, w)


# ----------------------------------------------------------------------------
# Kernel 2: fused Q/K/V projections -- one pallas_call, three accumulators.
# Handles cross-attention (distinct Q/K/V inputs) without stacking copies.
# ----------------------------------------------------------------------------
def _qkv_kernel(xq_ref, xk_ref, xv_ref, wq_ref, wk_ref, wv_ref,
                oq_ref, ok_ref, ov_ref, aq, ak, av):
    @pl.when(pl.program_id(2) == 0)
    def _init():
        aq[...] = jnp.zeros_like(aq)
        ak[...] = jnp.zeros_like(ak)
        av[...] = jnp.zeros_like(av)

    aq[...] += jax.lax.dot_general(
        xq_ref[...], wq_ref[...], _DN_NT, preferred_element_type=jnp.float32)
    ak[...] += jax.lax.dot_general(
        xk_ref[...], wk_ref[...], _DN_NT, preferred_element_type=jnp.float32)
    av[...] += jax.lax.dot_general(
        xv_ref[...], wv_ref[...], _DN_NT, preferred_element_type=jnp.float32)

    @pl.when(pl.program_id(2) == pl.num_programs(2) - 1)
    def _done():
        oq_ref[...] = aq[...].astype(oq_ref.dtype)
        ok_ref[...] = ak[...].astype(ok_ref.dtype)
        ov_ref[...] = av[...].astype(ov_ref.dtype)


def pallas_qkv_proj(xq, xk, xv, wq, wk, wv, *, tm=256, tn=256, tk=512):
    M, K = xq.shape
    N = wq.shape[0]
    tm, tn, tk = _tile(M, tm), _tile(N, tn), _tile(K, tk)
    grid = (M // tm, N // tn, K // tk)
    x_spec = pl.BlockSpec((tm, tk), lambda i, j, k: (i, k))
    w_spec = pl.BlockSpec((tn, tk), lambda i, j, k: (j, k))
    o_spec = pl.BlockSpec((tm, tn), lambda i, j, k: (i, j))
    out_sd = jax.ShapeDtypeStruct((M, N), xq.dtype)
    return pl.pallas_call(
        _qkv_kernel,
        out_shape=(out_sd, out_sd, out_sd),
        grid_spec=pltpu.PrefetchScalarGridSpec(
            num_scalar_prefetch=0,
            grid=grid,
            in_specs=[x_spec, x_spec, x_spec, w_spec, w_spec, w_spec],
            out_specs=[o_spec, o_spec, o_spec],
            scratch_shapes=[pltpu.VMEM((tm, tn), jnp.float32)] * 3,
        ),
        compiler_params=pltpu.CompilerParams(
            dimension_semantics=("parallel", "parallel", "arbitrary"),
            vmem_limit_bytes=64 * 1024 * 1024,
        ),
    )(xq, xk, xv, wq, wk, wv)


# ----------------------------------------------------------------------------
# Kernel 3: attention.  One grid step = one batch row, ALL heads computed
# inside the kernel from last-dim slices (no head-split transposes in HBM),
# output written lane-dense as the full [T, H] head-concat.
# ----------------------------------------------------------------------------
def _make_attn_kernel(n_splits, dk, scale, has_mask):
    def kernel(*refs):
        if has_mask:
            q_ref, k_ref, v_ref, m_ref, o_ref = refs
            # masked_fill_(mask, -inf): additive -inf where mask is set
            neg = jnp.where(m_ref[0] != 0, -jnp.inf, 0.0).astype(jnp.float32)
        else:
            q_ref, k_ref, v_ref, o_ref = refs
            neg = None

        q = q_ref[0]  # [T, H]
        k = k_ref[0]  # [T, H]
        v = v_ref[0]  # [T, H]

        # TODO(synk): for long T, switch to an online-softmax (flash) formulation
        # tiling over KV blocks with m/l/acc scratch instead of full [T, T] scores.
        outs = []
        for h in range(n_splits):
            sl = slice(h * dk, (h + 1) * dk)
            qh = q[:, sl] * scale                       # fold 1/sqrt(dk) into q (O(T*dk))
            # QK^T without transposing k (contract last axes on the MXU)
            s = jax.lax.dot_general(
                qh, k[:, sl], _DN_NT, preferred_element_type=jnp.float32)  # [T, T] f32
            if neg is not None:
                s = s + neg
            # numerically stable softmax, f32 math
            m = jnp.max(s, axis=-1, keepdims=True)
            p = jnp.exp(s - m)
            l = jnp.sum(p, axis=-1, keepdims=True)
            w = p * pl.reciprocal(l, approx=True)       # EUP reciprocal (free slot)
            outs.append(jax.lax.dot_general(
                w.astype(v.dtype), v[:, sl],
                (((1,), (0,)), ((), ())),
                preferred_element_type=jnp.float32))
        # head concat happens here -> single lane-dense [T, H] store
        o_ref[0] = jnp.concatenate(outs, axis=-1).astype(o_ref.dtype)

    return kernel


def pallas_attention(qw, kw, vw, n_splits, mask=None):
    """qw/kw/vw: [B, T, H] projected activations; mask: optional [B, T, T] bool."""
    B, T, H = qw.shape
    dk = H // n_splits
    scale = 1.0 / math.sqrt(dk)

    io_spec = pl.BlockSpec((1, T, H), lambda b: (b, 0, 0))
    in_specs = [io_spec, io_spec, io_spec]
    args = [qw, kw, vw]
    if mask is not None:
        in_specs.append(pl.BlockSpec((1, T, T), lambda b: (b, 0, 0)))
        args.append(mask.astype(jnp.float32))

    return pl.pallas_call(
        _make_attn_kernel(n_splits, dk, scale, mask is not None),
        out_shape=jax.ShapeDtypeStruct((B, T, H), qw.dtype),
        grid_spec=pltpu.PrefetchScalarGridSpec(
            num_scalar_prefetch=0,
            grid=(B,),
            in_specs=in_specs,
            out_specs=io_spec,
        ),
        compiler_params=pltpu.CompilerParams(
            dimension_semantics=("parallel",),
            vmem_limit_bytes=64 * 1024 * 1024,
        ),
    )(*args)


# ----------------------------------------------------------------------------
# MultiHead forward
# ----------------------------------------------------------------------------
def multi_head_forward(params, Q, K, V, n_splits, mask=None):
    B, T, H = Q.shape
    assert H % n_splits == 0

    # fused Q/K/V projections (one kernel launch, weights stay [out, in])
    QW, KW, VW = pallas_qkv_proj(
        Q.reshape(B * T, H), K.reshape(B * T, H), V.reshape(B * T, H),
        params["Wq"], params["Wk"], params["Wv"])
    QW = QW.reshape(B, T, H)
    KW = KW.reshape(B, T, H)
    VW = VW.reshape(B, T, H)

    # attention over all heads per batch row; output already head-concatenated
    c = pallas_attention(QW, KW, VW, n_splits, mask=mask)  # [B, T, H]

    # output projection
    out = pallas_linear(c.reshape(B * T, H), params["Wo"]).reshape(B, T, H)
    return out


# ----------------------------------------------------------------------------
# Pure-JAX reference (mirrors the PyTorch module exactly) for verification
# ----------------------------------------------------------------------------
def reference_forward(params, Q, K, V, n_splits, mask=None):
    B, T, H = Q.shape
    dk = H // n_splits
    QW = Q @ params["Wq"].T
    KW = K @ params["Wk"].T
    VW = V @ params["Wv"].T

    def heads(x):
        return x.reshape(B, T, n_splits, dk).transpose(2, 0, 1, 3).reshape(
            n_splits * B, T, dk)

    q, k, v = heads(QW), heads(KW), heads(VW)
    w = jnp.einsum("bid,bjd->bij", q, k)
    if mask is not None:
        mrep = jnp.concatenate([mask] * n_splits, axis=0)
        w = jnp.where(mrep, -jnp.inf, w)
    w = jax.nn.softmax(w / math.sqrt(dk), axis=-1)
    c = jnp.einsum("bij,bjd->bid", w, v)
    c = c.reshape(n_splits, B, T, dk).transpose(1, 2, 0, 3).reshape(B, T, H)
    return c @ params["Wo"].T


if __name__ == "__main__":
    B, T, H, n_splits = 2, 8, 32, 4  # hidden_size=32, n_splits=4 -> dk=8

    key = jax.random.PRNGKey(0)
    ks = jax.random.split(key, 7)
    params = {
        "Wq": jax.random.normal(ks[0], (H, H), jnp.float32) * 0.1,
        "Wk": jax.random.normal(ks[1], (H, H), jnp.float32) * 0.1,
        "Wv": jax.random.normal(ks[2], (H, H), jnp.float32) * 0.1,
        "Wo": jax.random.normal(ks[3], (H, H), jnp.float32) * 0.1,
    }
    Q = jax.random.normal(ks[4], (B, T, H), jnp.float32)
    K = jax.random.normal(ks[5], (B, T, H), jnp.float32)
    V = jax.random.normal(ks[6], (B, T, H), jnp.float32)

    # ---- unmasked path ----
    out = jax.block_until_ready(multi_head_forward(params, Q, K, V, n_splits))
    ref = reference_forward(params, Q, K, V, n_splits)
    assert out.shape == (B, T, H)
    assert jnp.allclose(out, ref, atol=2e-3, rtol=2e-3), "mismatch (no mask)"

    # ---- masked path (causal mask; True == masked out, like masked_fill_) ----
    mask = jnp.broadcast_to(jnp.triu(jnp.ones((T, T), jnp.bool_), k=1), (B, T, T))
    out_m = jax.block_until_ready(
        multi_head_forward(params, Q, K, V, n_splits, mask=mask))
    ref_m = reference_forward(params, Q, K, V, n_splits, mask=mask)
    assert jnp.allclose(out_m, ref_m, atol=2e-3, rtol=2e-3), "mismatch (mask)"

    print("KERNEL_OK")
</pallas_src>

<mosaic_0001>
module attributes {stable_mosaic.version = 11 : i64} {
  func.func @_qkv_kernel(%arg0: i32, %arg1: i32, %arg2: i32, %arg3: memref<16x32xf32, #tpu.memory_space<vmem>>, %arg4: memref<16x32xf32, #tpu.memory_space<vmem>>, %arg5: memref<16x32xf32, #tpu.memory_space<vmem>>, %arg6: memref<32x32xf32, #tpu.memory_space<vmem>>, %arg7: memref<32x32xf32, #tpu.memory_space<vmem>>, %arg8: memref<32x32xf32, #tpu.memory_space<vmem>>, %arg9: memref<16x32xf32, #tpu.memory_space<vmem>>, %arg10: memref<16x32xf32, #tpu.memory_space<vmem>>, %arg11: memref<16x32xf32, #tpu.memory_space<vmem>>, %arg12: memref<16x32xf32, #tpu.memory_space<vmem>>, %arg13: memref<16x32xf32, #tpu.memory_space<vmem>>, %arg14: memref<16x32xf32, #tpu.memory_space<vmem>>) attributes {dimension_semantics = [#tpu.dimension_semantics<parallel>, #tpu.dimension_semantics<parallel>, #tpu.dimension_semantics<arbitrary>], iteration_bounds = array<i64: 1, 1, 1>, scalar_prefetch = 0 : i64, scratch_operands = 3 : i64, tpu.core_type = #tpu.core_type<tc>, window_params = [{transform_indices = @transform_0, window_bounds = array<i64: 16, 32>}, {transform_indices = @transform_1, window_bounds = array<i64: 16, 32>}, {transform_indices = @transform_2, window_bounds = array<i64: 16, 32>}, {transform_indices = @transform_3, window_bounds = array<i64: 32, 32>}, {transform_indices = @transform_4, window_bounds = array<i64: 32, 32>}, {transform_indices = @transform_5, window_bounds = array<i64: 32, 32>}, {transform_indices = @transform_6, window_bounds = array<i64: 16, 32>}, {transform_indices = @transform_7, window_bounds = array<i64: 16, 32>}, {transform_indices = @transform_8, window_bounds = array<i64: 16, 32>}]} {
    %c0_i32 = arith.constant 0 : i32
    %0 = arith.cmpi eq, %arg2, %c0_i32 : i32
    %1 = arith.extui %0 : i1 to i32
    %c0_i32_0 = arith.constant 0 : i32
    %2 = arith.cmpi ne, %1, %c0_i32_0 : i32
    scf.if %2 {
      %cst_28 = arith.constant 0.000000e+00 : f32
      %24 = vector.broadcast %cst_28 : f32 to vector<16x32xf32>
      %c0_29 = arith.constant 0 : index
      %c0_30 = arith.constant 0 : index
      %25 = vector.load %arg12[%c0_29, %c0_30] : memref<16x32xf32, #tpu.memory_space<vmem>>, vector<16x32xf32>
      tpu.vector_store %arg12[%c0_29, %c0_30], %24 {strides = array<i32>} : memref<16x32xf32, #tpu.memory_space<vmem>>, vector<16x32xf32>,
      %cst_31 = arith.constant 0.000000e+00 : f32
      %26 = vector.broadcast %cst_31 : f32 to vector<16x32xf32>
      %c0_32 = arith.constant 0 : index
      %c0_33 = arith.constant 0 : index
      %27 = vector.load %arg13[%c0_32, %c0_33] : memref<16x32xf32, #tpu.memory_space<vmem>>, vector<16x32xf32>
      tpu.vector_store %arg13[%c0_32, %c0_33], %26 {strides = array<i32>} : memref<16x32xf32, #tpu.memory_space<vmem>>, vector<16x32xf32>,
      %cst_34 = arith.constant 0.000000e+00 : f32
      %28 = vector.broadcast %cst_34 : f32 to vector<16x32xf32>
      %c0_35 = arith.constant 0 : index
      %c0_36 = arith.constant 0 : index
      %29 = vector.load %arg14[%c0_35, %c0_36] : memref<16x32xf32, #tpu.memory_space<vmem>>, vector<16x32xf32>
      tpu.vector_store %arg14[%c0_35, %c0_36], %28 {strides = array<i32>} : memref<16x32xf32, #tpu.memory_space<vmem>>, vector<16x32xf32>,
    } else {
    }
    %c0 = arith.constant 0 : index
    %c0_1 = arith.constant 0 : index
    %3 = vector.load %arg12[%c0, %c0_1] : memref<16x32xf32, #tpu.memory_space<vmem>>, vector<16x32xf32>
    %c0_2 = arith.constant 0 : index
    %c0_3 = arith.constant 0 : index
    %4 = vector.load %arg3[%c0_2, %c0_3] : memref<16x32xf32, #tpu.memory_space<vmem>>, vector<16x32xf32>
    %c0_4 = arith.constant 0 : index
    %c0_5 = arith.constant 0 : index
    %5 = vector.load %arg6[%c0_4, %c0_5] : memref<32x32xf32, #tpu.memory_space<vmem>>, vector<32x32xf32>
    %cst = arith.constant dense<0.000000e+00> : vector<16x32xf32>
    %6 = tpu.matmul %4, %5, %cst {dimension_numbers = #tpu.dot_dimension_numbers<[1], [1], [0], [0], [0, 0, 1, 0], [], []>} : vector<16x32xf32>, vector<32x32xf32>, vector<16x32xf32> -> vector<16x32xf32>
    %7 = arith.addf %3, %6 : vector<16x32xf32>
    %c0_6 = arith.constant 0 : index
    %c0_7 = arith.constant 0 : index
    %8 = vector.load %arg12[%c0_6, %c0_7] : memref<16x32xf32, #tpu.memory_space<vmem>>, vector<16x32xf32>
    tpu.vector_store %arg12[%c0_6, %c0_7], %7 {strides = array<i32>} : memref<16x32xf32, #tpu.memory_space<vmem>>, vector<16x32xf32>,
    %c0_8 = arith.constant 0 : index
    %c0_9 = arith.constant 0 : index
    %9 = vector.load %arg13[%c0_8, %c0_9] : memref<16x32xf32, #tpu.memory_space<vmem>>, vector<16x32xf32>
    %c0_10 = arith.constant 0 : index
    %c0_11 = arith.constant 0 : index
    %10 = vector.load %arg4[%c0_10, %c0_11] : memref<16x32xf32, #tpu.memory_space<vmem>>, vector<16x32xf32>
    %c0_12 = arith.constant 0 : index
    %c0_13 = arith.constant 0 : index
    %11 = vector.load %arg7[%c0_12, %c0_13] : memref<32x32xf32, #tpu.memory_space<vmem>>, vector<32x32xf32>
    %cst_14 = arith.constant dense<0.000000e+00> : vector<16x32xf32>
    %12 = tpu.matmul %10, %11, %cst_14 {dimension_numbers = #tpu.dot_dimension_numbers<[1], [1], [0], [0], [0, 0, 1, 0], [], []>} : vector<16x32xf32>, vector<32x32xf32>, vector<16x32xf32> -> vector<16x32xf32>
    %13 = arith.addf %9, %12 : vector<16x32xf32>
    %c0_15 = arith.constant 0 : index
    %c0_16 = arith.constant 0 : index
    %14 = vector.load %arg13[%c0_15, %c0_16] : memref<16x32xf32, #tpu.memory_space<vmem>>, vector<16x32xf32>
    tpu.vector_store %arg13[%c0_15, %c0_16], %13 {strides = array<i32>} : memref<16x32xf32, #tpu.memory_space<vmem>>, vector<16x32xf32>,
    %c0_17 = arith.constant 0 : index
    %c0_18 = arith.constant 0 : index
    %15 = vector.load %arg14[%c0_17, %c0_18] : memref<16x32xf32, #tpu.memory_space<vmem>>, vector<16x32xf32>
    %c0_19 = arith.constant 0 : index
    %c0_20 = arith.constant 0 : index
    %16 = vector.load %arg5[%c0_19, %c0_20] : memref<16x32xf32, #tpu.memory_space<vmem>>, vector<16x32xf32>
    %c0_21 = arith.constant 0 : index
    %c0_22 = arith.constant 0 : index
    %17 = vector.load %arg8[%c0_21, %c0_22] : memref<32x32xf32, #tpu.memory_space<vmem>>, vector<32x32xf32>
    %cst_23 = arith.constant dense<0.000000e+00> : vector<16x32xf32>
    %18 = tpu.matmul %16, %17, %cst_23 {dimension_numbers = #tpu.dot_dimension_numbers<[1], [1], [0], [0], [0, 0, 1, 0], [], []>} : vector<16x32xf32>, vector<32x32xf32>, vector<16x32xf32> -> vector<16x32xf32>
    %19 = arith.addf %15, %18 : vector<16x32xf32>
    %c0_24 = arith.constant 0 : index
    %c0_25 = arith.constant 0 : index
    %20 = vector.load %arg14[%c0_24, %c0_25] : memref<16x32xf32, #tpu.memory_space<vmem>>, vector<16x32xf32>
    tpu.vector_store %arg14[%c0_24, %c0_25], %19 {strides = array<i32>} : memref<16x32xf32, #tpu.memory_space<vmem>>, vector<16x32xf32>,
    %c0_i32_26 = arith.constant 0 : i32
    %21 = arith.cmpi eq, %arg2, %c0_i32_26 : i32
    %22 = arith.extui %21 : i1 to i32
    %c0_i32_27 = arith.constant 0 : i32
    %23 = arith.cmpi ne, %22, %c0_i32_27 : i32
    scf.if %23 {
      %c0_28 = arith.constant 0 : index
      %c0_29 = arith.constant 0 : index
      %24 = vector.load %arg12[%c0_28, %c0_29] : memref<16x32xf32, #tpu.memory_space<vmem>>, vector<16x32xf32>
      %c0_30 = arith.constant 0 : index
      %c0_31 = arith.constant 0 : index
      %25 = vector.load %arg9[%c0_30, %c0_31] : memref<16x32xf32, #tpu.memory_space<vmem>>, vector<16x32xf32>
      tpu.vector_store %arg9[%c0_30, %c0_31], %24 {strides = array<i32>} : memref<16x32xf32, #tpu.memory_space<vmem>>, vector<16x32xf32>,
      %c0_32 = arith.constant 0 : index
      %c0_33 = arith.constant 0 : index
      %26 = vector.load %arg13[%c0_32, %c0_33] : memref<16x32xf32, #tpu.memory_space<vmem>>, vector<16x32xf32>
      %c0_34 = arith.constant 0 : index
      %c0_35 = arith.constant 0 : index
      %27 = vector.load %arg10[%c0_34, %c0_35] : memref<16x32xf32, #tpu.memory_space<vmem>>, vector<16x32xf32>
      tpu.vector_store %arg10[%c0_34, %c0_35], %26 {strides = array<i32>} : memref<16x32xf32, #tpu.memory_space<vmem>>, vector<16x32xf32>,
      %c0_36 = arith.constant 0 : index
      %c0_37 = arith.constant 0 : index
      %28 = vector.load %arg14[%c0_36, %c0_37] : memref<16x32xf32, #tpu.memory_space<vmem>>, vector<16x32xf32>
      %c0_38 = arith.constant 0 : index
      %c0_39 = arith.constant 0 : index
      %29 = vector.load %arg11[%c0_38, %c0_39] : memref<16x32xf32, #tpu.memory_space<vmem>>, vector<16x32xf32>
      tpu.vector_store %arg11[%c0_38, %c0_39], %28 {strides = array<i32>} : memref<16x32xf32, #tpu.memory_space<vmem>>, vector<16x32xf32>,
    } else {
    }
    return
  }
  func.func @transform_0(%arg0: i32, %arg1: i32, %arg2: i32) -> (i32, i32) {
    %c0_i32 = arith.constant 0 : i32
    return %arg0, %arg2 : i32, i32
  }
  func.func @transform_1(%arg0: i32, %arg1: i32, %arg2: i32) -> (i32, i32) {
    %c0_i32 = arith.constant 0 : i32
    return %arg0, %arg2 : i32, i32
  }
  func.func @transform_2(%arg0: i32, %arg1: i32, %arg2: i32) -> (i32, i32) {
    %c0_i32 = arith.constant 0 : i32
    return %arg0, %arg2 : i32, i32
  }
  func.func @transform_3(%arg0: i32, %arg1: i32, %arg2: i32) -> (i32, i32) {
    %c0_i32 = arith.constant 0 : i32
    return %arg1, %arg2 : i32, i32
  }
  func.func @transform_4(%arg0: i32, %arg1: i32, %arg2: i32) -> (i32, i32) {
    %c0_i32 = arith.constant 0 : i32
    return %arg1, %arg2 : i32, i32
  }
  func.func @transform_5(%arg0: i32, %arg1: i32, %arg2: i32) -> (i32, i32) {
    %c0_i32 = arith.constant 0 : i32
    return %arg1, %arg2 : i32, i32
  }
  func.func @transform_6(%arg0: i32, %arg1: i32, %arg2: i32) -> (i32, i32) {
    %c0_i32 = arith.constant 0 : i32
    return %arg0, %arg1 : i32, i32
  }
  func.func @transform_7(%arg0: i32, %arg1: i32, %arg2: i32) -> (i32, i32) {
    %c0_i32 = arith.constant 0 : i32
    return %arg0, %arg1 : i32, i32
  }
  func.func @transform_8(%arg0: i32, %arg1: i32, %arg2: i32) -> (i32, i32) {
    %c0_i32 = arith.constant 0 : i32
    return %arg0, %arg1 : i32, i32
  }
}

</mosaic_0001>

<llo_original>
// kernel: tpu_custom_call.1
$region0: #{tpu_custom_call.1}
  #allocation0 [shape = 'u32[]', space=smem, size = 0x4, offset = 0x4, fixed_abs, tag = 'smem constant byte address 0x4 - core index']
  #allocation1 [shape = 'u32[144,128]{1,0:T(1,128)}', space=vmem, size = 0x12000, scoped, tag = 'internal scratch']
  #allocation2 [shape = 'f32[16,32]{1,0:T(8,128)}', space=vmem, size = 0x2000, scoped, tag = 'scratch operand']
  #allocation3 [shape = 'f32[16,32]{1,0:T(8,128)}', space=vmem, size = 0x2000, scoped, tag = 'scratch operand']
  #allocation4 [shape = 'f32[16,32]{1,0:T(8,128)}', space=vmem, size = 0x2000, scoped, tag = 'scratch operand']
  %s0 = inlined_call_operand.hbm [shape: f32[16,32], index: 0, kind: input, shape index: {}]
  %s1 = inlined_call_operand.hbm [shape: f32[16,32], index: 1, kind: input, shape index: {}]
  %s2 = inlined_call_operand.hbm [shape: f32[16,32], index: 2, kind: input, shape index: {}]
  %s3 = inlined_call_operand.hbm [shape: f32[32,32], index: 3, kind: input, shape index: {}]
  %s4 = inlined_call_operand.hbm [shape: f32[32,32], index: 4, kind: input, shape index: {}]
  %s5 = inlined_call_operand.hbm [shape: f32[32,32], index: 5, kind: input, shape index: {}]
  %s6 = inlined_call_operand.hbm [shape: f32[16,32], index: 6, kind: output, shape index: {0}]
  %s7 = inlined_call_operand.hbm [shape: f32[16,32], index: 7, kind: output, shape index: {1}]
  %s8 = inlined_call_operand.hbm [shape: f32[16,32], index: 8, kind: output, shape index: {2}]
  %9 = xla_tuple %s6, %s7, %s8
  %s10 = sld [smem:[#allocation0]]
  $region82: #{tpu_custom_call.1} parent=0
    _
  %s12 = ssub.s32 1, %s10
  %s13 = scalar_select 0, %s12, %s10
  $region1: #{tpu_custom_call.1} parent=0
    #allocation5 [shape = 'u8[8192]{0}', space=vmem, size = 0x2000, scoped, tag = 'input window, operand 0, single buffered']
    #allocation6 [shape = 's32[1]{0}', space=sflag, size = 0x4, scoped, tag = 'scoped memory for tpu_custom_call.1']
    #allocation7 [shape = 's32[1]{0}', space=sflag, size = 0x4, scoped, tag = 'scoped memory for tpu_custom_call.1']
    #allocation8 [shape = 'u8[8192]{0}', space=vmem, size = 0x2000, scoped, tag = 'input window, operand 1, single buffered']
    #allocation9 [shape = 's32[1]{0}', space=sflag, size = 0x4, scoped, tag = 'scoped memory for tpu_custom_call.1']
    #allocation10 [shape = 'u8[8192]{0}', space=vmem, size = 0x2000, scoped, tag = 'input window, operand 2, single buffered']
    #allocation11 [shape = 'u8[16384]{0}', space=vmem, size = 0x4000, scoped, tag = 'input window, operand 3, single buffered']
    #allocation12 [shape = 's32[1]{0}', space=sflag, size = 0x4, scoped, tag = 'scoped memory for tpu_custom_call.1']
    #allocation13 [shape = 'u8[16384]{0}', space=vmem, size = 0x4000, scoped, tag = 'input window, operand 4, single buffered']
    #allocation14 [shape = 'u8[16384]{0}', space=vmem, size = 0x4000, scoped, tag = 'input window, operand 5, single buffered']
    #allocation15 [shape = 's32[1]{0}', space=sflag, size = 0x4, scoped, tag = 'scoped memory for tpu_custom_call.1']
    #allocation16 [shape = 'u8[8192]{0}', space=vmem, size = 0x2000, scoped, tag = 'output window, operand 0, single buffered']
    #allocation17 [shape = 'u8[8192]{0}', space=vmem, size = 0x2000, scoped, tag = 'output window, operand 1, single buffered']
    #allocation18 [shape = 's32[1]{0}', space=sflag, size = 0x4, scoped, tag = 'scoped memory for tpu_custom_call.1']
    #allocation19 [shape = 'u8[8192]{0}', space=vmem, size = 0x2000, scoped, tag = 'output window, operand 2, single buffered']
    %14 = vsyncpa [#allocation6], 0
    %15 = vsyncpa [#allocation9], 0
    %16 = vsyncpa [#allocation12], 0
    %17 = vsyncpa [#allocation15], 0
    %18 = vsyncpa [#allocation7], 0
    %19 = vsyncpa [#allocation18], 0
    // Predicated region
    $region2: #{tpu_custom_call.1} parent=1 // pred_check
      _
    $region3: #{tpu_custom_call.1} parent=1 // pred_check_branch
      %21 = sbr.rel (0) target = $region5
    $region4: #{tpu_custom_call.1} parent=1 // pred_region
      %s23 = ssub.s32 256, 256
      %24 = vsyncadd [#allocation6], %s23
      %s25 = sshll.u32 [#allocation5], 4
      %s26 = int_to_ptr.vmem [resolvable:$true] %s25
      %31 = dma.hbm_to_vmem [thread:$0]  %s0, 256, %s26, [#allocation6], 128, 128, 8
    $region5: #{tpu_custom_call.1} parent=1 // pred_fallthru
      _
    // Predicated region
    $region6: #{tpu_custom_call.1} parent=1 // pred_check
      _
    $region7: #{tpu_custom_call.1} parent=1 // pred_check_branch
      %33 = sbr.rel (0) target = $region9
    $region8: #{tpu_custom_call.1} parent=1 // pred_region
      %s35 = ssub.s32 256, 256
      %36 = vsyncadd [#allocation9], %s35
      %s37 = sshll.u32 [#allocation8], 4
      %s38 = int_to_ptr.vmem [resolvable:$true] %s37
      %43 = dma.hbm_to_vmem [thread:$0]  %s1, 256, %s38, [#allocation9], 128, 128, 8
    $region9: #{tpu_custom_call.1} parent=1 // pred_fallthru
      _
    // Predicated region
    $region10: #{tpu_custom_call.1} parent=1 // pred_check
      _
    $region11: #{tpu_custom_call.1} parent=1 // pred_check_branch
      %45 = sbr.rel (0) target = $region13
    $region12: #{tpu_custom_call.1} parent=1 // pred_region
      %s47 = ssub.s32 256, 256
      %48 = vsyncadd [#allocation9], %s47
      %s49 = sshll.u32 [#allocation10], 4
      %s50 = int_to_ptr.vmem [resolvable:$true] %s49
      %55 = dma.hbm_to_vmem [thread:$0]  %s2, 256, %s50, [#allocation9], 128, 128, 8
    $region13: #{tpu_custom_call.1} parent=1 // pred_fallthru
      _
    // Predicated region
    $region14: #{tpu_custom_call.1} parent=1 // pred_check
      _
    $region15: #{tpu_custom_call.1} parent=1 // pred_check_branch
      %57 = sbr.rel (0) target = $region17
    $region16: #{tpu_custom_call.1} parent=1 // pred_region
      %s59 = ssub.s32 512, 512
      %60 = vsyncadd [#allocation12], %s59
      %s61 = sshll.u32 [#allocation11], 4
      %s62 = int_to_ptr.vmem [resolvable:$true] %s61
      %67 = dma.hbm_to_vmem [thread:$0]  %s3, 512, %s62, [#allocation12], 128, 128, 8
    $region17: #{tpu_custom_call.1} parent=1 // pred_fallthru
      _
    // Predicated region
    $region18: #{tpu_custom_call.1} parent=1 // pred_check
      _
    $region19: #{tpu_custom_call.1} parent=1 // pred_check_branch
      %69 = sbr.rel (0) target = $region21
    $region20: #{tpu_custom_call.1} parent=1 // pred_region
      %s71 = ssub.s32 512, 512
      %72 = vsyncadd [#allocation12], %s71
      %s73 = sshll.u32 [#allocation13], 4
      %s74 = int_to_ptr.vmem [resolvable:$true] %s73
      %79 = dma.hbm_to_vmem [thread:$0]  %s4, 512, %s74, [#allocation12], 128, 128, 8
    $region21: #{tpu_custom_call.1} parent=1 // pred_fallthru
      _
    // Predicated region
    $region22: #{tpu_custom_call.1} parent=1 // pred_check
      _
    $region23: #{tpu_custom_call.1} parent=1 // pred_check_branch
      %81 = sbr.rel (0) target = $region25
    $region24: #{tpu_custom_call.1} parent=1 // pred_region
      %s83 = ssub.s32 512, 512
      %84 = vsyncadd [#allocation15], %s83
      %s85 = sshll.u32 [#allocation14], 4
      %s86 = int_to_ptr.vmem [resolvable:$true] %s85
      %91 = dma.hbm_to_vmem [thread:$0]  %s5, 512, %s86, [#allocation15], 128, 128, 8
    $region25: #{tpu_custom_call.1} parent=1 // pred_fallthru
      _
    // Predicated region
    $region26: #{tpu_custom_call.1} parent=1 // pred_check
      _
    $region27: #{tpu_custom_call.1} parent=1 // pred_check_branch
      %93 = sbr.rel (0) target = $region29
    $region28: #{tpu_custom_call.1} parent=1 // pred_region
      %94 = dma.done [#allocation6], 256
    $region29: #{tpu_custom_call.1} parent=1 // pred_fallthru
      _
    // Predicated region
    $region30: #{tpu_custom_call.1} parent=1 // pred_check
      _
    $region31: #{tpu_custom_call.1} parent=1 // pred_check_branch
      %96 = sbr.rel (0) target = $region33
    $region32: #{tpu_custom_call.1} parent=1 // pred_region
      %97 = dma.done [#allocation9], 256
    $region33: #{tpu_custom_call.1} parent=1 // pred_fallthru
      _
    // Predicated region
    $region34: #{tpu_custom_call.1} parent=1 // pred_check
      _
    $region35: #{tpu_custom_call.1} parent=1 // pred_check_branch
      %99 = sbr.rel (0) target = $region37
    $region36: #{tpu_custom_call.1} parent=1 // pred_region
      %100 = dma.done [#allocation9], 256
    $region37: #{tpu_custom_call.1} parent=1 // pred_fallthru
      _
    // Predicated region
    $region38: #{tpu_custom_call.1} parent=1 // pred_check
      _
    $region39: #{tpu_custom_call.1} parent=1 // pred_check_branch
      %102 = sbr.rel (0) target = $region41
    $region40: #{tpu_custom_call.1} parent=1 // pred_region
      %103 = dma.done [#allocation12], 512
    $region41: #{tpu_custom_call.1} parent=1 // pred_fallthru
      _
    // Predicated region
    $region42: #{tpu_custom_call.1} parent=1 // pred_check
      _
    $region43: #{tpu_custom_call.1} parent=1 // pred_check_branch
      %105 = sbr.rel (0) target = $region45
    $region44: #{tpu_custom_call.1} parent=1 // pred_region
      %106 = dma.done [#allocation12], 512
    $region45: #{tpu_custom_call.1} parent=1 // pred_fallthru
      _
    // Predicated region
    $region46: #{tpu_custom_call.1} parent=1 // pred_check
      _
    $region47: #{tpu_custom_call.1} parent=1 // pred_check_branch
      %108 = sbr.rel (0) target = $region49
    $region48: #{tpu_custom_call.1} parent=1 // pred_region
      %109 = dma.done [#allocation15], 512
    $region49: #{tpu_custom_call.1} parent=1 // pred_fallthru
      _
    %p110 = scmp.eq.s32.totalorder 0, 0
    // Predicated region
    $region50: #{tpu_custom_call.1} parent=1 // pred_check
      %p111 = pneg %p110
    $region51: #{tpu_custom_call.1} parent=1 // pred_check_branch
      %113 = sbr.rel (%p111) target = $region53
    $region52: #{tpu_custom_call.1} parent=1 // pred_region
      %vm114 = vcmask 261120
      %115 = vst.msk [vmem:[#allocation2] sm:$0xff] %vm114, 0.0
      %116 = vst.msk [vmem:[#allocation2 + $0x8] sm:$0xff] %vm114, 0.0
      %117 = vst.msk [vmem:[#allocation3] sm:$0xff] %vm114, 0.0
      %118 = vst.msk [vmem:[#allocation3 + $0x8] sm:$0xff] %vm114, 0.0
      %119 = vst.msk [vmem:[#allocation4] sm:$0xff] %vm114, 0.0
      %120 = vst.msk [vmem:[#allocation4 + $0x8] sm:$0xff] %vm114, 0.0
    $region53: #{tpu_custom_call.1} parent=1 // pred_fallthru
      _
    %v121 = vld [vmem:[#allocation2] sm:$0xff]
    %v122 = vld [vmem:[#allocation2 + $0x8] sm:$0xff]
    %v123 = vld [vmem:[#allocation5] sm:$0xff]
    %v124 = vld [vmem:[#allocation5 + $0x8] sm:$0xff]
    %v125 = vld [vmem:[#allocation11] sm:$0xff]
    %v126 = vld [vmem:[#allocation11 + $0x8] sm:$0xff]
    %v127 = vld [vmem:[#allocation11 + $0x10] sm:$0xff]
    %v128 = vld [vmem:[#allocation11 + $0x18] sm:$0xff]
    %vm129 = vcmask 261120
    %v131 = vsel %vm129, %v123, 0
    %v134 = vsel %vm129, %v124, 0
    %v137 = vsel %vm129, %v125, 0
    %v140 = vsel %vm129, %v126, 0
    %v143 = vsel %vm129, %v127, 0
    %v146 = vsel %vm129, %v128, 0
    %148 = vmatprep.subr.mxu0 0.0
    %149 = vmatpush1.xpose.msra.mxu0 %v137
    %150 = vmatprep.subr.mxu0 0.0
    %151 = vmatpush1.xpose.msra.mxu0 %v140
    %152 = vmatprep.subr.mxu0 0.0
    %153 = vmatpush1.xpose.msra.mxu0 %v143
    %154 = vmatprep.subr.mxu0 0.0
    %155 = vmatpush1.xpose.msra.mxu0 %v146
    %156 = vmatprep.subr.mxu0 0.0
    %157 = vmatpush1.xpose.msra.mxu0 0.0
    %158 = vmatprep.subr.mxu0 0.0
    %159 = vmatpush1.xpose.msra.mxu0 0.0
    %160 = vmatprep.subr.mxu0 0.0
    %161 = vmatpush1.xpose.msra.mxu0 0.0
    %162 = vmatprep.subr.mxu0 0.0
    %163 = vmatpush1.xpose.msra.mxu0 0.0
    %164 = vmatprep.subr.mxu0 0.0
    %165 = vmatpush1.xpose.msra.mxu0 0.0
    %166 = vmatprep.subr.mxu0 0.0
    %167 = vmatpush1.xpose.msra.mxu0 0.0
    %168 = vmatprep.subr.mxu0 0.0
    %169 = vmatpush1.xpose.msra.mxu0 0.0
    %170 = vmatprep.subr.mxu0 0.0
    %171 = vmatpush1.xpose.msra.mxu0 0.0
    %172 = vmatprep.subr.mxu0 0.0
    %173 = vmatpush1.xpose.msra.mxu0 0.0
    %174 = vmatprep.subr.mxu0 0.0
    %175 = vmatpush1.xpose.msra.mxu0 0.0
    %176 = vmatprep.subr.mxu0 0.0
    %177 = vmatpush1.xpose.msra.mxu0 0.0
    %178 = vmatprep.subr.mxu0 0.0
    %179 = vmatpush1.xpose.msra.mxu0 0.0
    %180 = vmatprep.subr.mxu0 0.0
    %181 = vmatpush1.xpose.msra.mxu0 0.0
    %182 = vmatprep.subr.mxu0 0.0
    %183 = vmatpush1.xpose.msra.mxu0 0.0
    %184 = vmatprep.subr.mxu0 0.0
    %185 = vmatpush1.xpose.msra.mxu0 0.0
    %186 = vmatprep.subr.mxu0 0.0
    %187 = vmatpush1.xpose.msra.mxu0 0.0
    %188 = vmatprep.subr.mxu0 0.0
    %189 = vmatpush1.xpose.msra.mxu0 0.0
    %190 = vmatprep.subr.mxu0 0.0
    %191 = vmatpush1.xpose.msra.mxu0 0.0
    %192 = vmatprep.subr.mxu0 0.0
    %193 = vmatpush1.xpose.msra.mxu0 0.0
    %194 = vmatprep.subr.mxu0 0.0
    %195 = vmatpush1.xpose.msra.mxu0 0.0
    %196 = vmatprep.subr.mxu0 0.0
    %197 = vmatpush1.xpose.msra.mxu0 0.0
    %198 = vmatprep.subr.mxu0 0.0
    %199 = vmatpush1.xpose.msra.mxu0 0.0
    %200 = vmatprep.subr.mxu0 0.0
    %201 = vmatpush1.xpose.msra.mxu0 0.0
    %202 = vmatprep.subr.mxu0 0.0
    %203 = vmatpush1.xpose.msra.mxu0 0.0
    %204 = vmatprep.subr.mxu0 0.0
    %205 = vmatpush1.xpose.msra.mxu0 0.0
    %206 = vmatprep.subr.mxu0 0.0
    %207 = vmatpush1.xpose.msra.mxu0 0.0
    %208 = vmatprep.subr.mxu0 0.0
    %209 = vmatpush1.xpose.msra.mxu0 0.0
    %210 = vmatprep.subr.mxu0 0.0
    %211 = vmatpush1.xpose.msra.mxu0 0.0
    %212 = vmatprep.mubr.f32.mxu0 0.0
    %213 = vmatmul.mubr.f32.gmra.mrb[0].mxu0 %v131
    %v214 = vpop.f32.mrb[0].mxu0
    %v215 = vadd.f32 0.0, %v214
    %v216 = vpop.f32.mrb[0].mxu0
    %217 = vmatprep.mubr.f32.mxu0 0.0
    %218 = vmatmul.mubr.f32.gmra.mrb[0].mxu0 %v134
    %v219 = vpop.f32.mrb[0].mxu0
    %v220 = vadd.f32 0.0, %v219
    %v221 = vpop.f32.mrb[0].mxu0
    %222 = vdwg.mxu0
    %v223 = vadd.f32 %v121, %v215
    %v224 = vadd.f32 %v122, %v220
    %225 = vst.msk [vmem:[#allocation2] sm:$0xff] %vm129, %v223
    %226 = vst.msk [vmem:[#allocation2 + $0x8] sm:$0xff] %vm129, %v224
    %v227 = vld [vmem:[#allocation3] sm:$0xff]
    %v228 = vld [vmem:[#allocation3 + $0x8] sm:$0xff]
    %v229 = vld [vmem:[#allocation8] sm:$0xff]
    %v230 = vld [vmem:[#allocation8 + $0x8] sm:$0xff]
    %v231 = vld [vmem:[#allocation13] sm:$0xff]
    %v232 = vld [vmem:[#allocation13 + $0x8] sm:$0xff]
    %v233 = vld [vmem:[#allocation13 + $0x10] sm:$0xff]
    %v234 = vld [vmem:[#allocation13 + $0x18] sm:$0xff]
    %v236 = vsel %vm129, %v229, 0
    %v239 = vsel %vm129, %v230, 0
    %v242 = vsel %vm129, %v231, 0
    %v245 = vsel %vm129, %v232, 0
    %v248 = vsel %vm129, %v233, 0
    %v251 = vsel %vm129, %v234, 0
    %253 = vmatprep.subr.mxu0 0.0
    %254 = vmatpush1.xpose.msra.mxu0 %v242
    %255 = vmatprep.subr.mxu0 0.0
    %256 = vmatpush1.xpose.msra.mxu0 %v245
    %257 = vmatprep.subr.mxu0 0.0
    %258 = vmatpush1.xpose.msra.mxu0 %v248
    %259 = vmatprep.subr.mxu0 0.0
    %260 = vmatpush1.xpose.msra.mxu0 %v251
    %261 = vmatprep.subr.mxu0 0.0
    %262 = vmatpush1.xpose.msra.mxu0 0.0
    %263 = vmatprep.subr.mxu0 0.0
    %264 = vmatpush1.xpose.msra.mxu0 0.0
    %265 = vmatprep.subr.mxu0 0.0
    %266 = vmatpush1.xpose.msra.mxu0 0.0
    %267 = vmatprep.subr.mxu0 0.0
    %268 = vmatpush1.xpose.msra.mxu0 0.0
    %269 = vmatprep.subr.mxu0 0.0
    %270 = vmatpush1.xpose.msra.mxu0 0.0
    %271 = vmatprep.subr.mxu0 0.0
    %272 = vmatpush1.xpose.msra.mxu0 0.0
    %273 = vmatprep.subr.mxu0 0.0
    %274 = vmatpush1.xpose.msra.mxu0 0.0
    %275 = vmatprep.subr.mxu0 0.0
    %276 = vmatpush1.xpose.msra.mxu0 0.0
    %277 = vmatprep.subr.mxu0 0.0
    %278 = vmatpush1.xpose.msra.mxu0 0.0
    %279 = vmatprep.subr.mxu0 0.0
    %280 = vmatpush1.xpose.msra.mxu0 0.0
    %281 = vmatprep.subr.mxu0 0.0
    %282 = vmatpush1.xpose.msra.mxu0 0.0
    %283 = vmatprep.subr.mxu0 0.0
    %284 = vmatpush1.xpose.msra.mxu0 0.0
    %285 = vmatprep.subr.mxu0 0.0
    %286 = vmatpush1.xpose.msra.mxu0 0.0
    %287 = vmatprep.subr.mxu0 0.0
    %288 = vmatpush1.xpose.msra.mxu0 0.0
    %289 = vmatprep.subr.mxu0 0.0
    %290 = vmatpush1.xpose.msra.mxu0 0.0
    %291 = vmatprep.subr.mxu0 0.0
    %292 = vmatpush1.xpose.msra.mxu0 0.0
    %293 = vmatprep.subr.mxu0 0.0
    %294 = vmatpush1.xpose.msra.mxu0 0.0
    %295 = vmatprep.subr.mxu0 0.0
    %296 = vmatpush1.xpose.msra.mxu0 0.0
    %297 = vmatprep.subr.mxu0 0.0
    %298 = vmatpush1.xpose.msra.mxu0 0.0
    %299 = vmatprep.subr.mxu0 0.0
    %300 = vmatpush1.xpose.msra.mxu0 0.0
    %301 = vmatprep.subr.mxu0 0.0
    %302 = vmatpush1.xpose.msra.mxu0 0.0
    %303 = vmatprep.subr.mxu0 0.0
    %304 = vmatpush1.xpose.msra.mxu0 0.0
    %305 = vmatprep.subr.mxu0 0.0
    %306 = vmatpush1.xpose.msra.mxu0 0.0
    %307 = vmatprep.subr.mxu0 0.0
    %308 = vmatpush1.xpose.msra.mxu0 0.0
    %309 = vmatprep.subr.mxu0 0.0
    %310 = vmatpush1.xpose.msra.mxu0 0.0
    %311 = vmatprep.subr.mxu0 0.0
    %312 = vmatpush1.xpose.msra.mxu0 0.0
    %313 = vmatprep.subr.mxu0 0.0
    %314 = vmatpush1.xpose.msra.mxu0 0.0
    %315 = vmatprep.subr.mxu0 0.0
    %316 = vmatpush1.xpose.msra.mxu0 0.0
    %317 = vmatprep.mubr.f32.mxu0 0.0
    %318 = vmatmul.mubr.f32.gmra.mrb[0].mxu0 %v236
    %v319 = vpop.f32.mrb[0].mxu0
    %v320 = vadd.f32 0.0, %v319
    %v321 = vpop.f32.mrb[0].mxu0
    %322 = vmatprep.mubr.f32.mxu0 0.0
    %323 = vmatmul.mubr.f32.gmra.mrb[0].mxu0 %v239
    %v324 = vpop.f32.mrb[0].mxu0
    %v325 = vadd.f32 0.0, %v324
    %v326 = vpop.f32.mrb[0].mxu0
    %327 = vdwg.mxu0
    %v328 = vadd.f32 %v227, %v320
    %v329 = vadd.f32 %v228, %v325
    %330 = vst.msk [vmem:[#allocation3] sm:$0xff] %vm129, %v328
    %331 = vst.msk [vmem:[#allocation3 + $0x8] sm:$0xff] %vm129, %v329
    %v332 = vld [vmem:[#allocation4] sm:$0xff]
    %v333 = vld [vmem:[#allocation4 + $0x8] sm:$0xff]
    %v334 = vld [vmem:[#allocation10] sm:$0xff]
    %v335 = vld [vmem:[#allocation10 + $0x8] sm:$0xff]
    %v336 = vld [vmem:[#allocation14] sm:$0xff]
    %v337 = vld [vmem:[#allocation14 + $0x8] sm:$0xff]
    %v338 = vld [vmem:[#allocation14 + $0x10] sm:$0xff]
    %v339 = vld [vmem:[#allocation14 + $0x18] sm:$0xff]
    %v341 = vsel %vm129, %v334, 0
    %v344 = vsel %vm129, %v335, 0
    %v347 = vsel %vm129, %v336, 0
    %v350 = vsel %vm129, %v337, 0
    %v353 = vsel %vm129, %v338, 0
    %v356 = vsel %vm129, %v339, 0
    %358 = vmatprep.subr.mxu0 0.0
    %359 = vmatpush1.xpose.msra.mxu0 %v347
    %360 = vmatprep.subr.mxu0 0.0
    %361 = vmatpush1.xpose.msra.mxu0 %v350
    %362 = vmatprep.subr.mxu0 0.0
    %363 = vmatpush1.xpose.msra.mxu0 %v353
    %364 = vmatprep.subr.mxu0 0.0
    %365 = vmatpush1.xpose.msra.mxu0 %v356
    %366 = vmatprep.subr.mxu0 0.0
    %367 = vmatpush1.xpose.msra.mxu0 0.0
    %368 = vmatprep.subr.mxu0 0.0
    %369 = vmatpush1.xpose.msra.mxu0 0.0
    %370 = vmatprep.subr.mxu0 0.0
    %371 = vmatpush1.xpose.msra.mxu0 0.0
    %372 = vmatprep.subr.mxu0 0.0
    %373 = vmatpush1.xpose.msra.mxu0 0.0
    %374 = vmatprep.subr.mxu0 0.0
    %375 = vmatpush1.xpose.msra.mxu0 0.0
    %376 = vmatprep.subr.mxu0 0.0
    %377 = vmatpush1.xpose.msra.mxu0 0.0
    %378 = vmatprep.subr.mxu0 0.0
    %379 = vmatpush1.xpose.msra.mxu0 0.0
    %380 = vmatprep.subr.mxu0 0.0
    %381 = vmatpush1.xpose.msra.mxu0 0.0
    %382 = vmatprep.subr.mxu0 0.0
    %383 = vmatpush1.xpose.msra.mxu0 0.0
    %384 = vmatprep.subr.mxu0 0.0
    %385 = vmatpush1.xpose.msra.mxu0 0.0
    %386 = vmatprep.subr.mxu0 0.0
    %387 = vmatpush1.xpose.msra.mxu0 0.0
    %388 = vmatprep.subr.mxu0 0.0
    %389 = vmatpush1.xpose.msra.mxu0 0.0
    %390 = vmatprep.subr.mxu0 0.0
    %391 = vmatpush1.xpose.msra.mxu0 0.0
    %392 = vmatprep.subr.mxu0 0.0
    %393 = vmatpush1.xpose.msra.mxu0 0.0
    %394 = vmatprep.subr.mxu0 0.0
    %395 = vmatpush1.xpose.msra.mxu0 0.0
    %396 = vmatprep.subr.mxu0 0.0
    %397 = vmatpush1.xpose.msra.mxu0 0.0
    %398 = vmatprep.subr.mxu0 0.0
    %399 = vmatpush1.xpose.msra.mxu0 0.0
    %400 = vmatprep.subr.mxu0 0.0
    %401 = vmatpush1.xpose.msra.mxu0 0.0
    %402 = vmatprep.subr.mxu0 0.0
    %403 = vmatpush1.xpose.msra.mxu0 0.0
    %404 = vmatprep.subr.mxu0 0.0
    %405 = vmatpush1.xpose.msra.mxu0 0.0
    %406 = vmatprep.subr.mxu0 0.0
    %407 = vmatpush1.xpose.msra.mxu0 0.0
    %408 = vmatprep.subr.mxu0 0.0
    %409 = vmatpush1.xpose.msra.mxu0 0.0
    %410 = vmatprep.subr.mxu0 0.0
    %411 = vmatpush1.xpose.msra.mxu0 0.0
    %412 = vmatprep.subr.mxu0 0.0
    %413 = vmatpush1.xpose.msra.mxu0 0.0
    %414 = vmatprep.subr.mxu0 0.0
    %415 = vmatpush1.xpose.msra.mxu0 0.0
    %416 = vmatprep.subr.mxu0 0.0
    %417 = vmatpush1.xpose.msra.mxu0 0.0
    %418 = vmatprep.subr.mxu0 0.0
    %419 = vmatpush1.xpose.msra.mxu0 0.0
    %420 = vmatprep.subr.mxu0 0.0
    %421 = vmatpush1.xpose.msra.mxu0 0.0
    %422 = vmatprep.mubr.f32.mxu0 0.0
    %423 = vmatmul.mubr.f32.gmra.mrb[0].mxu0 %v341
    %v424 = vpop.f32.mrb[0].mxu0
    %v425 = vadd.f32 0.0, %v424
    %v426 = vpop.f32.mrb[0].mxu0
    %427 = vmatprep.mubr.f32.mxu0 0.0
    %428 = vmatmul.mubr.f32.gmra.mrb[0].mxu0 %v344
    %v429 = vpop.f32.mrb[0].mxu0
    %v430 = vadd.f32 0.0, %v429
    %v431 = vpop.f32.mrb[0].mxu0
    %432 = vdwg.mxu0
    %v433 = vadd.f32 %v332, %v425
    %v434 = vadd.f32 %v333, %v430
    %435 = vst.msk [vmem:[#allocation4] sm:$0xff] %vm129, %v433
    %436 = vst.msk [vmem:[#allocation4 + $0x8] sm:$0xff] %vm129, %v434
    // Predicated region
    $region54: #{tpu_custom_call.1} parent=1 // pred_check
      %p437 = pneg %p110
    $region55: #{tpu_custom_call.1} parent=1 // pred_check_branch
      %439 = sbr.rel (%p437) target = $region57
    $region56: #{tpu_custom_call.1} parent=1 // pred_region
      %v440 = vld [vmem:[#allocation2] sm:$0xff]
      %v441 = vld [vmem:[#allocation2 + $0x8] sm:$0xff]
      %442 = vst.msk [vmem:[#allocation16] sm:$0xff] %vm129, %v440
      %443 = vst.msk [vmem:[#allocation16 + $0x8] sm:$0xff] %vm129, %v441
      %v444 = vld [vmem:[#allocation3] sm:$0xff]
      %v445 = vld [vmem:[#allocation3 + $0x8] sm:$0xff]
      %446 = vst.msk [vmem:[#allocation17] sm:$0xff] %vm129, %v444
      %447 = vst.msk [vmem:[#allocation17 + $0x8] sm:$0xff] %vm129, %v445
      %v448 = vld [vmem:[#allocation4] sm:$0xff]
      %v449 = vld [vmem:[#allocation4 + $0x8] sm:$0xff]
      %450 = vst.msk [vmem:[#allocation19] sm:$0xff] %vm129, %v448
      %451 = vst.msk [vmem:[#allocation19 + $0x8] sm:$0xff] %vm129, %v449
    $region57: #{tpu_custom_call.1} parent=1 // pred_fallthru
      _
    // Predicated region
    $region58: #{tpu_custom_call.1} parent=1 // pred_check
      _
    $region59: #{tpu_custom_call.1} parent=1 // pred_check_branch
      %453 = sbr.rel (0) target = $region61
    $region60: #{tpu_custom_call.1} parent=1 // pred_region
      %s455 = ssub.s32 256, 256
      %456 = vsyncadd [#allocation7], %s455
      %s457 = sshll.u32 [#allocation16], 4
      %s458 = int_to_ptr.vmem [resolvable:$true] %s457
      %463 = dma.vmem_to_hbm [thread:$0]  %s458, 256, %s6, [#allocation7], 128, 128, 8
    $region61: #{tpu_custom_call.1} parent=1 // pred_fallthru
      _
    // Predicated region
    $region62: #{tpu_custom_call.1} parent=1 // pred_check
      _
    $region63: #{tpu_custom_call.1} parent=1 // pred_check_branch
      %465 = sbr.rel (0) target = $region65
    $region64: #{tpu_custom_call.1} parent=1 // pred_region
      %s467 = ssub.s32 256, 256
      %468 = vsyncadd [#allocation18], %s467
      %s469 = sshll.u32 [#allocation17], 4
      %s470 = int_to_ptr.vmem [resolvable:$true] %s469
      %475 = dma.vmem_to_hbm [thread:$0]  %s470, 256, %s7, [#allocation18], 128, 128, 8
    $region65: #{tpu_custom_call.1} parent=1 // pred_fallthru
      _
    // Predicated region
    $region66: #{tpu_custom_call.1} parent=1 // pred_check
      _
    $region67: #{tpu_custom_call.1} parent=1 // pred_check_branch
      %477 = sbr.rel (0) target = $region69
    $region68: #{tpu_custom_call.1} parent=1 // pred_region
      %s479 = ssub.s32 256, 256
      %480 = vsyncadd [#allocation18], %s479
      %s481 = sshll.u32 [#allocation19], 4
      %s482 = int_to_ptr.vmem [resolvable:$true] %s481
      %487 = dma.vmem_to_hbm [thread:$0]  %s482, 256, %s8, [#allocation18], 128, 128, 8
    $region69: #{tpu_custom_call.1} parent=1 // pred_fallthru
      _
    // Predicated region
    $region70: #{tpu_custom_call.1} parent=1 // pred_check
      _
    $region71: #{tpu_custom_call.1} parent=1 // pred_check_branch
      %489 = sbr.rel (0) target = $region73
    $region72: #{tpu_custom_call.1} parent=1 // pred_region
      %490 = dma.done [#allocation7], 256
    $region73: #{tpu_custom_call.1} parent=1 // pred_fallthru
      _
    // Predicated region
    $region74: #{tpu_custom_call.1} parent=1 // pred_check
      _
    $region75: #{tpu_custom_call.1} parent=1 // pred_check_branch
      %492 = sbr.rel (0) target = $region77
    $region76: #{tpu_custom_call.1} parent=1 // pred_region
      %493 = dma.done [#allocation18], 256
    $region77: #{tpu_custom_call.1} parent=1 // pred_fallthru
      _
    // Predicated region
    $region78: #{tpu_custom_call.1} parent=1 // pred_check
      _
    $region79: #{tpu_custom_call.1} parent=1 // pred_check_branch
      %495 = sbr.rel (0) target = $region81
    $region80: #{tpu_custom_call.1} parent=1 // pred_region
      %496 = dma.done [#allocation18], 256
    $region81: #{tpu_custom_call.1} parent=1 // pred_fallthru
      _
    %497 = vsyncpa [#allocation6], 1
    %498 = vsyncpa [#allocation9], 1
    %499 = vsyncpa [#allocation12], 1
    %500 = vsyncpa [#allocation15], 1
    %501 = vsyncpa [#allocation7], 1
    %502 = vsyncpa [#allocation18], 1

</llo_original>
